<compile_context>
chip_gen: v5e
topology: v5e:2x2
jax: 0.10.0
libtpu: 0.0.40
codegen_flags: <defaults>
</compile_context>

<pallas_src>
import functools

import numpy as np

import jax
import jax.numpy as jnp
from jax.experimental import pallas as pl
from jax.experimental.pallas import tpu as pltpu


def _round_up(a: int, b: int) -> int:
    return (a + b - 1) // b * b


def _rbf_kernel(x_ref, o_ref, *, num_grids, group, grid_min, grid_step, c2):
    # x_ref: (group, TM) block of the pre-transposed input, group = 128 // num_grids
    #        x_ref[t, m] == x_flat[group * (m0 + m) + t]
    # o_ref: (TM, 128) output block; o_ref[m, t*G + g] = rbf(x_flat[group*(m0+m)+t], g)
    g = num_grids
    tm = o_ref.shape[0]

    # Per-output-lane RBF centers, laid on the 128 sublanes of the pre-transpose
    # value tile: sublane s = t*G + g  ->  center[g],  g = s & (G-1).
    sidx = jax.lax.broadcasted_iota(jnp.int32, (group * g, 1), 0)
    centers = grid_min + grid_step * (sidx & (g - 1)).astype(jnp.float32)  # (128, 1)

    x = x_ref[...].astype(jnp.float32)                                     # (group, TM)

    chunk = 512  # multiple of 128; keeps intermediates small and transposes aligned
    for j0 in range(0, tm, chunk):
        j1 = min(tm, j0 + chunk)
        ch = j1 - j0
        xc = x[:, j0:j1]                                                   # (group, ch)
        # Repeat-interleave each sublane num_grids times.  Sublane broadcast +
        # major-dim collapse is layout-preserving (last dim unchanged).
        xa = jnp.broadcast_to(xc[:, None, :], (group, g, ch))
        xa = xa.reshape(group * g, ch)                                     # (128, ch)
        t = xa - centers
        vals = jnp.exp2(t * t * c2)                                        # (128, ch) f32
        # One 2D transpose on the idle XLU puts values in final row-major
        # x.shape + (G,) order; the store is lane-dense (last dim 128).
        o_ref[j0:j1, :] = vals.T.astype(o_ref.dtype)


def radial_basis_function(x,
                          grid_min: float = -2.0,
                          grid_max: float = 2.0,
                          num_grids: int = 8,
                          denominator: float = None,
                          block_rows: int = 4096):
    """Pallas TPU equivalent of RadialBasisFunction.forward."""
    # Match PyTorch: `denominator or default` (an explicit 0.0 falls back too).
    denominator = denominator or (grid_max - grid_min) / (num_grids - 1)
    grid_step = (grid_max - grid_min) / (num_grids - 1) if num_grids > 1 else 0.0
    # exp(-(t/d)^2) == exp2(t*t * c2),  c2 = -log2(e) / d^2   (folds scale+negate)
    c2 = -1.4426950408889634 / (denominator * denominator)

    orig_shape = x.shape
    out_dtype = x.dtype if jnp.issubdtype(x.dtype, jnp.floating) else jnp.float32
    n = int(x.size)
    if n == 0:
        return jnp.zeros(orig_shape + (num_grids,), out_dtype)

    if 128 % num_grids != 0:
        # TODO(synk): interleaved fast path needs num_grids | 128; plain-XLA fallback.
        centers = grid_min + grid_step * jnp.arange(num_grids, dtype=jnp.float32)
        t = x.astype(jnp.float32)[..., None] - centers
        return jnp.exp2(t * t * c2).astype(out_dtype)

    g = num_grids
    group = 128 // g                       # input elements per 128-lane output row
    m = -(-n // group)                     # output rows
    n_pad = m * group

    # Block rows: ~2 MiB f32 output per step, multiple of 128 (aligned in-kernel
    # transposes + lane-dense input block), capped so there are >= 2 grid steps
    # whenever the problem allows it (keeps both v7x TensorCores busy).
    block_rows = max(128, _round_up(int(block_rows), 128))
    tm = max(128, min(block_rows, _round_up(pl.cdiv(m, 2), 128)))
    grid_steps = pl.cdiv(m, tm)

    x_flat = jnp.reshape(x, (n,))
    if n_pad != n:
        # Tiny pad (< group elems); fuses into the pre-transpose copy below.
        x_flat = jnp.pad(x_flat, (0, n_pad - n))
    # Input-side pre-transpose (O(N) traffic, vs O(G*N) for an output transpose):
    # x_t[t, j] = x_flat[group*j + t]
    x_t = jnp.transpose(jnp.reshape(x_flat, (m, group)))   # (group, m)

    in_item = np.dtype(x_t.dtype).itemsize
    out_item = np.dtype(out_dtype).itemsize
    cost = pl.CostEstimate(
        flops=3 * g * n_pad,
        transcendentals=g * n_pad,
        bytes_accessed=n_pad * in_item + m * 128 * out_item,
    )

    out = pl.pallas_call(
        functools.partial(_rbf_kernel,
                          num_grids=g,
                          group=group,
                          grid_min=float(grid_min),
                          grid_step=float(grid_step),
                          c2=float(c2)),
        out_shape=jax.ShapeDtypeStruct((m, 128), out_dtype),
        grid_spec=pl.GridSpec(
            grid=(grid_steps,),
            in_specs=[pl.BlockSpec((group, tm), lambda i: (0, i))],
            out_specs=pl.BlockSpec((tm, 128), lambda i: (i, 0)),
        ),
        compiler_params=pltpu.CompilerParams(
            dimension_semantics=("parallel",),
            vmem_limit_bytes=32 * 1024 * 1024,
        ),
        cost_estimate=cost,
    )(x_t)

    # Output is already in flat row-major x.shape + (G,) order.
    if n_pad != n:
        return jnp.reshape(out, (-1,))[: n * g].reshape(orig_shape + (g,))
    return jnp.reshape(out, orig_shape + (g,))


def _reference(x, grid_min=-2.0, grid_max=2.0, num_grids=8, denominator=None):
    denominator = denominator or (grid_max - grid_min) / (num_grids - 1)
    centers = jnp.linspace(grid_min, grid_max, num_grids, dtype=jnp.float32)
    return jnp.exp(-(((x.astype(jnp.float32)[..., None] - centers)
                      / denominator) ** 2))


if __name__ == "__main__":
    rbf = jax.jit(radial_basis_function)

    # NCHW-style conv input, as typically fed to torch_conv_kan layers (f32).
    x = jax.random.normal(jax.random.PRNGKey(0), (2, 4, 16, 16),
                          dtype=jnp.float32) * 2.0
    out = jax.block_until_ready(rbf(x))
    ref = _reference(x)
    assert out.shape == x.shape + (8,), out.shape
    assert out.dtype == x.dtype, out.dtype
    assert jnp.allclose(out, ref, atol=1e-5, rtol=1e-5), float(
        jnp.max(jnp.abs(out - ref)))

    # bf16 path: kernel stores directly in bf16 (halved write traffic); this shape
    # also exercises the multi-step grid (2 parallel steps).
    xb = (jax.random.normal(jax.random.PRNGKey(1), (2, 8, 32, 32),
                            dtype=jnp.float32) * 2.0).astype(jnp.bfloat16)
    outb = jax.block_until_ready(rbf(xb))
    refb = _reference(xb)
    assert outb.shape == xb.shape + (8,), outb.shape
    assert outb.dtype == jnp.bfloat16, outb.dtype
    assert jnp.allclose(outb.astype(jnp.float32), refb, atol=2e-2), float(
        jnp.max(jnp.abs(outb.astype(jnp.float32) - refb)))

    print("KERNEL_OK")
</pallas_src>

<mosaic_0001>
module attributes {stable_mosaic.version = 11 : i64} {
  func.func @_rbf_kernel(%arg0: i32, %arg1: memref<16x128xf32, #tpu.memory_space<vmem>>, %arg2: memref<128x128xf32, #tpu.memory_space<vmem>>) attributes {dimension_semantics = [#tpu.dimension_semantics<parallel>], iteration_bounds = array<i64: 1>, scalar_prefetch = 0 : i64, scratch_operands = 0 : i64, tpu.core_type = #tpu.core_type<tc>, window_params = [{transform_indices = @transform_0, window_bounds = array<i64: 16, 128>}, {transform_indices = @transform_1, window_bounds = array<i64: 128, 128>}]} {
    %0 = tpu.iota {dimensions = array<i32: 0>} : vector<128x1xi32>
    %c7_i32 = arith.constant 7 : i32
    %1 = vector.broadcast %c7_i32 : i32 to vector<128x1xi32>
    %2 = arith.andi %0, %1 : vector<128x1xi32>
    %3 = arith.sitofp %2 : vector<128x1xi32> to vector<128x1xf32>
    %cst = arith.constant 0.571428597 : f32
    %4 = vector.broadcast %cst : f32 to vector<128x1xf32>
    %5 = arith.mulf %4, %3 : vector<128x1xf32>
    %cst_0 = arith.constant -2.000000e+00 : f32
    %6 = vector.broadcast %cst_0 : f32 to vector<128x1xf32>
    %7 = arith.addf %6, %5 : vector<128x1xf32>
    %c0 = arith.constant 0 : index
    %c0_1 = arith.constant 0 : index
    %8 = vector.load %arg1[%c0, %c0_1] : memref<16x128xf32, #tpu.memory_space<vmem>>, vector<16x128xf32>
    %9 = vector.shape_cast %8 : vector<16x128xf32> to vector<16x1x128xf32>
    %10 = vector.shape_cast %9 : vector<16x1x128xf32> to vector<16x1x128xf32>
    %11 = vector.broadcast %10 : vector<16x1x128xf32> to vector<16x8x128xf32>
    %12 = vector.shape_cast %11 : vector<16x8x128xf32> to vector<128x128xf32>
    %13 = vector.broadcast %7 : vector<128x1xf32> to vector<128x128xf32>
    %14 = arith.subf %12, %13 : vector<128x128xf32>
    %15 = arith.mulf %14, %14 : vector<128x128xf32>
    %cst_2 = arith.constant -4.41825342 : f32
    %16 = vector.broadcast %cst_2 : f32 to vector<128x128xf32>
    %17 = arith.mulf %15, %16 : vector<128x128xf32>
    %18 = math.exp2 %17 : vector<128x128xf32>
    %19 = tpu.transpose %18, [1, 0] : vector<128x128xf32> -> vector<128x128xf32>
    %c0_3 = arith.constant 0 : index
    %c0_4 = arith.constant 0 : index
    %20 = vector.load %arg2[%c0_3, %c0_4] : memref<128x128xf32, #tpu.memory_space<vmem>>, vector<128x128xf32>
    tpu.vector_store %arg2[%c0_3, %c0_4], %19 {strides = array<i32>} : memref<128x128xf32, #tpu.memory_space<vmem>>, vector<128x128xf32>,
    return
  }
  func.func @transform_0(%arg0: i32) -> (i32, i32) {
    %c0_i32 = arith.constant 0 : i32
    %c0_i32_0 = arith.constant 0 : i32
    return %c0_i32, %arg0 : i32, i32
  }
  func.func @transform_1(%arg0: i32) -> (i32, i32) {
    %c0_i32 = arith.constant 0 : i32
    %c0_i32_0 = arith.constant 0 : i32
    return %arg0, %c0_i32 : i32, i32
  }
}

</mosaic_0001>

<llo_original>
// kernel: radial_basis_function.1
$region0: #{radial_basis_function.1}
  #allocation0 [shape = 'u32[]', space=smem, size = 0x4, offset = 0x4, fixed_abs, tag = 'smem constant byte address 0x4 - core index']
  #allocation1 [shape = 'u32[72,128]{1,0:T(1,128)}', space=vmem, size = 0x9000, scoped, tag = 'internal scratch']
  %s0 = inlined_call_operand.vmem [shape: f32[16,128], index: 0, kind: input, shape index: {}]
  %s1 = inlined_call_operand.vmem [shape: f32[128,128], index: 1, kind: output, shape index: {}]
  %s2 = sld [smem:[#allocation0]]
  $region14: #{radial_basis_function.1} parent=0
    _
  %s4 = ssub.s32 1, %s2
  %s5 = scalar_select 0, %s4, %s2
  // Predicated region
  $region2: #{radial_basis_function.1} parent=0 // pred_check
    _
  $region3: #{radial_basis_function.1} parent=0 // pred_check_branch
    %7 = sbr.rel (0) target = $region5
  $region4: #{radial_basis_function.1} parent=0 // pred_region
    _
  $region5: #{radial_basis_function.1} parent=0 // pred_fallthru
    _
  %v8 = vlaneseq
  %v9 = vshrl.u32 %v8, 7
  %v10 = vadd.s32 %v9, 8
  %v11 = vadd.s32 %v9, 16
  %v12 = vadd.s32 %v9, 24
  %v13 = vadd.s32 %v9, 32
  %v14 = vadd.s32 %v9, 40
  %v15 = vadd.s32 %v9, 48
  %v16 = vadd.s32 %v9, 56
  %v17 = vadd.s32 %v9, 64
  %v18 = vadd.s32 %v9, 72
  %v19 = vadd.s32 %v9, 80
  %v20 = vadd.s32 %v9, 88
  %v21 = vadd.s32 %v9, 96
  %v22 = vadd.s32 %v9, 104
  %v23 = vadd.s32 %v9, 112
  %v24 = vadd.s32 %v9, 120
  %v25 = vand.u32 %v9, 7
  %v26 = vand.u32 %v10, 7
  %v27 = vand.u32 %v11, 7
  %v28 = vand.u32 %v12, 7
  %v29 = vand.u32 %v13, 7
  %v30 = vand.u32 %v14, 7
  %v31 = vand.u32 %v15, 7
  %v32 = vand.u32 %v16, 7
  %v33 = vand.u32 %v17, 7
  %v34 = vand.u32 %v18, 7
  %v35 = vand.u32 %v19, 7
  %v36 = vand.u32 %v20, 7
  %v37 = vand.u32 %v21, 7
  %v38 = vand.u32 %v22, 7
  %v39 = vand.u32 %v23, 7
  %v40 = vand.u32 %v24, 7
  %v41 = vcvt.s32.f32 %v25
  %v42 = vcvt.s32.f32 %v26
  %v43 = vcvt.s32.f32 %v27
  %v44 = vcvt.s32.f32 %v28
  %v45 = vcvt.s32.f32 %v29
  %v46 = vcvt.s32.f32 %v30
  %v47 = vcvt.s32.f32 %v31
  %v48 = vcvt.s32.f32 %v32
  %v49 = vcvt.s32.f32 %v33
  %v50 = vcvt.s32.f32 %v34
  %v51 = vcvt.s32.f32 %v35
  %v52 = vcvt.s32.f32 %v36
  %v53 = vcvt.s32.f32 %v37
  %v54 = vcvt.s32.f32 %v38
  %v55 = vcvt.s32.f32 %v39
  %v56 = vcvt.s32.f32 %v40
  %v57 = vmul.f32 %v41, 0.5714286
  %v58 = vmul.f32 %v42, 0.5714286
  %v59 = vmul.f32 %v43, 0.5714286
  %v60 = vmul.f32 %v44, 0.5714286
  %v61 = vmul.f32 %v45, 0.5714286
  %v62 = vmul.f32 %v46, 0.5714286
  %v63 = vmul.f32 %v47, 0.5714286
  %v64 = vmul.f32 %v48, 0.5714286
  %v65 = vmul.f32 %v49, 0.5714286
  %v66 = vmul.f32 %v50, 0.5714286
  %v67 = vmul.f32 %v51, 0.5714286
  %v68 = vmul.f32 %v52, 0.5714286
  %v69 = vmul.f32 %v53, 0.5714286
  %v70 = vmul.f32 %v54, 0.5714286
  %v71 = vmul.f32 %v55, 0.5714286
  %v72 = vmul.f32 %v56, 0.5714286
  %v73 = vadd.f32 %v57, -2.0
  %v74 = vadd.f32 %v58, -2.0
  %v75 = vadd.f32 %v59, -2.0
  %v76 = vadd.f32 %v60, -2.0
  %v77 = vadd.f32 %v61, -2.0
  %v78 = vadd.f32 %v62, -2.0
  %v79 = vadd.f32 %v63, -2.0
  %v80 = vadd.f32 %v64, -2.0
  %v81 = vadd.f32 %v65, -2.0
  %v82 = vadd.f32 %v66, -2.0
  %v83 = vadd.f32 %v67, -2.0
  %v84 = vadd.f32 %v68, -2.0
  %v85 = vadd.f32 %v69, -2.0
  %v86 = vadd.f32 %v70, -2.0
  %v87 = vadd.f32 %v71, -2.0
  %v88 = vadd.f32 %v72, -2.0
  %v89 = vld [vmem:[%s0] sm:$0xff]
  %v90 = vld [vmem:[%s0 + $0x8] sm:$0xff]
  %v93 = vrot.slane %v89, 1
  %v94 = vrot.slane %v89, 2
  %v95 = vrot.slane %v89, 3
  %v96 = vrot.slane %v89, 4
  %v97 = vrot.slane %v89, 5
  %v98 = vrot.slane %v89, 6
  %v99 = vrot.slane %v89, 7
  %v100 = vrot.slane %v90, 1
  %v101 = vrot.slane %v90, 2
  %v102 = vrot.slane %v90, 3
  %v103 = vrot.slane %v90, 4
  %v104 = vrot.slane %v90, 5
  %v105 = vrot.slane %v90, 6
  %v106 = vrot.slane %v90, 7
  %v107 = vperm.slane %v89, 0
  %v108 = vperm.slane %v93, 0
  %v109 = vperm.slane %v94, 0
  %v110 = vperm.slane %v95, 0
  %v111 = vperm.slane %v96, 0
  %v112 = vperm.slane %v97, 0
  %v113 = vperm.slane %v98, 0
  %v114 = vperm.slane %v99, 0
  %v115 = vperm.slane %v90, 0
  %v116 = vperm.slane %v100, 0
  %v117 = vperm.slane %v101, 0
  %v118 = vperm.slane %v102, 0
  %v119 = vperm.slane %v103, 0
  %v120 = vperm.slane %v104, 0
  %v121 = vperm.slane %v105, 0
  %v122 = vperm.slane %v106, 0
  %v139 = vsub.f32 %v107, %v73
  %v140 = vsub.f32 %v108, %v74
  %v141 = vsub.f32 %v109, %v75
  %v142 = vsub.f32 %v110, %v76
  %v143 = vsub.f32 %v111, %v77
  %v144 = vsub.f32 %v112, %v78
  %v145 = vsub.f32 %v113, %v79
  %v146 = vsub.f32 %v114, %v80
  %v147 = vsub.f32 %v115, %v81
  %v148 = vsub.f32 %v116, %v82
  %v149 = vsub.f32 %v117, %v83
  %v150 = vsub.f32 %v118, %v84
  %v151 = vsub.f32 %v119, %v85
  %v152 = vsub.f32 %v120, %v86
  %v153 = vsub.f32 %v121, %v87
  %v154 = vsub.f32 %v122, %v88
  %v155 = vmul.f32 %v139, %v139
  %v156 = vmul.f32 %v140, %v140
  %v157 = vmul.f32 %v141, %v141
  %v158 = vmul.f32 %v142, %v142
  %v159 = vmul.f32 %v143, %v143
  %v160 = vmul.f32 %v144, %v144
  %v161 = vmul.f32 %v145, %v145
  %v162 = vmul.f32 %v146, %v146
  %v163 = vmul.f32 %v147, %v147
  %v164 = vmul.f32 %v148, %v148
  %v165 = vmul.f32 %v149, %v149
  %v166 = vmul.f32 %v150, %v150
  %v167 = vmul.f32 %v151, %v151
  %v168 = vmul.f32 %v152, %v152
  %v169 = vmul.f32 %v153, %v153
  %v170 = vmul.f32 %v154, %v154
  %v171 = vmul.f32 %v155, -4.4182534
  %v172 = vmul.f32 %v156, -4.4182534
  %v173 = vmul.f32 %v157, -4.4182534
  %v174 = vmul.f32 %v158, -4.4182534
  %v175 = vmul.f32 %v159, -4.4182534
  %v176 = vmul.f32 %v160, -4.4182534
  %v177 = vmul.f32 %v161, -4.4182534
  %v178 = vmul.f32 %v162, -4.4182534
  %v179 = vmul.f32 %v163, -4.4182534
  %v180 = vmul.f32 %v164, -4.4182534
  %v181 = vmul.f32 %v165, -4.4182534
  %v182 = vmul.f32 %v166, -4.4182534
  %v183 = vmul.f32 %v167, -4.4182534
  %v184 = vmul.f32 %v168, -4.4182534
  %v185 = vmul.f32 %v169, -4.4182534
  %v186 = vmul.f32 %v170, -4.4182534
  %v187 = vpow.pop %v171
  %v188 = vpow.pop %v172
  %v189 = vpow.pop %v173
  %v190 = vpow.pop %v174
  %v191 = vpow.pop %v175
  %v192 = vpow.pop %v176
  %v193 = vpow.pop %v177
  %v194 = vpow.pop %v178
  %v195 = vpow.pop %v179
  %v196 = vpow.pop %v180
  %v197 = vpow.pop %v181
  %v198 = vpow.pop %v182
  %v199 = vpow.pop %v183
  %v200 = vpow.pop %v184
  %v201 = vpow.pop %v185
  %v202 = vpow.pop %v186
  %203 = vxpose.xlu0.b32.start [1/16] %v187, 128
  %204 = vxpose.xlu0.b32.cont [2/16] %v188, 128
  %205 = vxpose.xlu0.b32.cont [3/16] %v189, 128
  %206 = vxpose.xlu0.b32.cont [4/16] %v190, 128
  %207 = vxpose.xlu0.b32.cont [5/16] %v191, 128
  %208 = vxpose.xlu0.b32.cont [6/16] %v192, 128
  %209 = vxpose.xlu0.b32.cont [7/16] %v193, 128
  %210 = vxpose.xlu0.b32.cont [8/16] %v194, 128
  %211 = vxpose.xlu0.b32.cont [9/16] %v195, 128
  %212 = vxpose.xlu0.b32.cont [10/16] %v196, 128
  %213 = vxpose.xlu0.b32.cont [11/16] %v197, 128
  %214 = vxpose.xlu0.b32.cont [12/16] %v198, 128
  %215 = vxpose.xlu0.b32.cont [13/16] %v199, 128
  %216 = vxpose.xlu0.b32.cont [14/16] %v200, 128
  %217 = vxpose.xlu0.b32.cont [15/16] %v201, 128
  %218 = vxpose.xlu0.b32.end [16/16] %v202, 128
  %v219 = vpop.trf.xlu0
  %v220 = vpop.trf.xlu0
  %v221 = vpop.trf.xlu0
  %v222 = vpop.trf.xlu0
  %v223 = vpop.trf.xlu0
  %v224 = vpop.trf.xlu0
  %v225 = vpop.trf.xlu0
  %v226 = vpop.trf.xlu0
  %v227 = vpop.trf.xlu0
  %v228 = vpop.trf.xlu0
  %v229 = vpop.trf.xlu0
  %v230 = vpop.trf.xlu0
  %v231 = vpop.trf.xlu0
  %v232 = vpop.trf.xlu0
  %v233 = vpop.trf.xlu0
  %v234 = vpop.trf.xlu0
  %235 = vst [vmem:[%s1] sm:$0xff] %v219
  %236 = vst [vmem:[%s1 + $0x8] sm:$0xff] %v220
  %237 = vst [vmem:[%s1 + $0x10] sm:$0xff] %v221
  %238 = vst [vmem:[%s1 + $0x18] sm:$0xff] %v222
  %239 = vst [vmem:[%s1 + $0x20] sm:$0xff] %v223
  %240 = vst [vmem:[%s1 + $0x28] sm:$0xff] %v224
  %241 = vst [vmem:[%s1 + $0x30] sm:$0xff] %v225
  %242 = vst [vmem:[%s1 + $0x38] sm:$0xff] %v226
  %243 = vst [vmem:[%s1 + $0x40] sm:$0xff] %v227
  %244 = vst [vmem:[%s1 + $0x48] sm:$0xff] %v228
  %245 = vst [vmem:[%s1 + $0x50] sm:$0xff] %v229
  %246 = vst [vmem:[%s1 + $0x58] sm:$0xff] %v230
  %247 = vst [vmem:[%s1 + $0x60] sm:$0xff] %v231
  %248 = vst [vmem:[%s1 + $0x68] sm:$0xff] %v232
  %249 = vst [vmem:[%s1 + $0x70] sm:$0xff] %v233
  %250 = vst [vmem:[%s1 + $0x78] sm:$0xff] %v234
  // Predicated region
  $region6: #{radial_basis_function.1} parent=0 // pred_check
    _
  $region7: #{radial_basis_function.1} parent=0 // pred_check_branch
    %252 = sbr.rel (0) target = $region9
  $region8: #{radial_basis_function.1} parent=0 // pred_region
    _
  $region9: #{radial_basis_function.1} parent=0 // pred_fallthru
    _
  // Predicated region
  $region10: #{radial_basis_function.1} parent=0 // pred_check
    _
  $region11: #{radial_basis_function.1} parent=0 // pred_check_branch
    %254 = sbr.rel (0) target = $region13
  $region12: #{radial_basis_function.1} parent=0 // pred_region
    _
  $region13: #{radial_basis_function.1} parent=0 // pred_fallthru
    _

</llo_original>
